<compile_context>
chip_gen: v7x
topology: tpu7x:2x2x1
jax: 0.10.0
libtpu: 0.0.40
codegen_flags: <defaults>
</compile_context>

<pallas_src>
import functools

import jax
import jax.numpy as jnp
from jax.experimental import pallas as pl
from jax.experimental.pallas import tpu as pltpu


def _round_up(x, m):
    return ((x + m - 1) // m) * m


def _deepcrossing_kernel(x_ref, w1_ref, b1_ref, w2_ref, b2_ref,
                         wo_ref, bo_ref, out_ref):
    # x_ref: [T, D] bf16 streamed tile (D is the true, unpadded feature width).
    x = x_ref[...].astype(jnp.float32)                               # [T, D]

    # Res layer 1: relu(x + x@W1 + b1) == relu(x @ (W1 + I_D) + b1).
    # w1_ref is [D, Dp]; columns D..Dp are zero, so padded lanes of h are 0.
    h = jnp.dot(x, w1_ref[...], preferred_element_type=jnp.float32) + b1_ref[...]
    x = jnp.maximum(h, 0.0)                                          # [T, Dp]

    # Res layer 2: identity folded only on the true DxD diagonal; padded
    # rows/cols of w2_ref are zero, so padded lanes stay exactly zero.
    h = jnp.dot(x, w2_ref[...], preferred_element_type=jnp.float32) + b2_ref[...]
    x = jnp.maximum(h, 0.0)                                          # [T, Dp]

    # Output layer (out_features = 1): VPU broadcast-multiply + lane reduce
    # instead of a 1-column MXU matmul; stored lane-dense as (1, T).
    s = jnp.sum(x * wo_ref[...], axis=-1)[None, :]                   # [1, T]
    out_ref[...] = jax.nn.sigmoid(s + bo_ref[...])


def deepcrossing_forward(feature_stack, w1p, b1p, w2p, b2p, wop, bop,
                         *, tile_b=8192, vmem_limit_bytes=32 * 1024 * 1024):
    """feature_stack: [B, D] bf16 (D unpadded).
    w1p: [D, Dp] f32 = W1 + I_D, column-padded with zeros.
    w2p: [Dp, Dp] f32 = W2 + I_D in the top-left DxD block, zeros elsewhere.
    b1p/b2p/wop: [1, Dp] (zero-padded); bop: [1, 1]."""
    B, D = feature_stack.shape
    Dp = w2p.shape[0]

    tile_b = min(tile_b, _round_up(B, 16))   # 16: bf16 sublane packing
    Bp = _round_up(B, tile_b)
    if Bp > tile_b and tile_b % 128 != 0:
        raise ValueError("tile_b must be a multiple of 128 when the batch "
                         "spans multiple tiles")
    if Bp != B:
        feature_stack = jnp.pad(feature_stack, ((0, Bp - B), (0, 0)))

    cost = pl.CostEstimate(
        flops=2 * Bp * Dp * (D + Dp + 1),
        transcendentals=Bp,
        bytes_accessed=(Bp * D * feature_stack.dtype.itemsize
                        + (D * Dp + Dp * Dp + 3 * Dp + 1) * 4
                        + Bp * 4),
    )

    out = pl.pallas_call(
        _deepcrossing_kernel,
        out_shape=jax.ShapeDtypeStruct((1, Bp), jnp.float32),
        grid=(Bp // tile_b,),
        in_specs=[
            pl.BlockSpec((tile_b, D), lambda i: (i, 0)),   # streamed bf16 tile
            pl.BlockSpec((D, Dp), lambda i: (0, 0)),       # W1 + I_D (resident)
            pl.BlockSpec((1, Dp), lambda i: (0, 0)),       # b1
            pl.BlockSpec((Dp, Dp), lambda i: (0, 0)),      # W2 + I_D (resident)
            pl.BlockSpec((1, Dp), lambda i: (0, 0)),       # b2
            pl.BlockSpec((1, Dp), lambda i: (0, 0)),       # wo (row vector)
            pl.BlockSpec((1, 1), lambda i: (0, 0)),        # bo
        ],
        out_specs=pl.BlockSpec((1, tile_b), lambda i: (0, i)),
        compiler_params=pltpu.CompilerParams(
            dimension_semantics=("parallel",),
            vmem_limit_bytes=vmem_limit_bytes),
        cost_estimate=cost,
    )(feature_stack, w1p, b1p, w2p, b2p, wop, bop)
    return out[0, :B].reshape(B, 1)


@functools.partial(jax.jit, static_argnames=("n_dense", "tile_b"))
def _deepcrossing_apply(params, x, *, n_dense, tile_b):
    """End-to-end jitted path: gather + concat (bf16) + Pallas kernel, so XLA
    can overlap the embedding gather with the kernel (cost_estimate helps)."""
    x_dense = x[:, :n_dense].astype(jnp.bfloat16)                    # [B, nd]
    x_sparse = x[:, n_dense:].astype(jnp.int32)                      # [B, ns]
    # Direct concat == torch's stack().permute(1,0,2).reshape(-1, ns*k),
    # without the transpose; emitted in bf16 and UNpadded ([B, D]).
    parts = [x_dense] + [tbl[x_sparse[:, i]].astype(jnp.bfloat16)
                         for i, tbl in enumerate(params["emb"])]
    feature_stack = jnp.concatenate(parts, axis=1)                   # [B, D] bf16
    return deepcrossing_forward(
        feature_stack, params["w1p"], params["b1p"], params["w2p"],
        params["b2p"], params["wop"], params["bop"], tile_b=tile_b)


class DeepCrossingJAX:
    """Deterministic-parameter JAX/Pallas port of the PyTorch DeepCrossing."""

    def __init__(self, feature_columns, k, key, *, tile_b=8192):
        self.k = k
        self.tile_b = tile_b
        self.dense_feature_columns, self.sparse_feature_columns = feature_columns
        self.n_dense = len(self.dense_feature_columns)
        self.n_sparse = len(self.sparse_feature_columns)
        self.sparse_dims = self.n_sparse * k
        self.dense_dims = self.sparse_dims + self.n_dense
        self.D = self.dense_dims
        self.Dp = _round_up(max(self.D, 128), 128)

        keys = jax.random.split(key, self.n_sparse + 6)

        # Sparse embedding tables (xavier-uniform style init, deterministic).
        self.emb_tables = []
        for i, sf in enumerate(self.sparse_feature_columns):
            fan_in, fan_out = sf["field_feat_num"], k
            bound = (6.0 / (fan_in + fan_out)) ** 0.5
            tbl = jax.random.uniform(
                keys[i], (fan_in, k), minval=-bound, maxval=bound,
                dtype=jnp.float32)
            self.emb_tables.append(tbl)

        D, Dp = self.D, self.Dp
        kb = 1.0 / (D ** 0.5)
        ko = self.n_sparse
        # Linear weights stored pre-transposed: [in, out].
        self.w1 = jax.random.uniform(keys[ko + 0], (D, D), minval=-kb, maxval=kb,
                                     dtype=jnp.float32)
        self.b1 = jax.random.uniform(keys[ko + 1], (1, D), minval=-kb, maxval=kb,
                                     dtype=jnp.float32)
        self.w2 = jax.random.uniform(keys[ko + 2], (D, D), minval=-kb, maxval=kb,
                                     dtype=jnp.float32)
        self.b2 = jax.random.uniform(keys[ko + 3], (1, D), minval=-kb, maxval=kb,
                                     dtype=jnp.float32)
        self.wo = jax.random.uniform(keys[ko + 4], (D, 1), minval=-kb, maxval=kb,
                                     dtype=jnp.float32)
        self.bo = jax.random.uniform(keys[ko + 5], (1, 1), minval=-kb, maxval=kb,
                                     dtype=jnp.float32)

        # Kernel-side parameters: identity folded ONLY on the true DxD
        # diagonal, then zero-padded to Dp columns (and rows for w2p) so the
        # kernel's padded lanes are computed as exact zeros.
        eye_d = jnp.eye(D, dtype=jnp.float32)
        pad_c = Dp - D
        self.params = {
            "emb": self.emb_tables,
            "w1p": jnp.pad(self.w1 + eye_d, ((0, 0), (0, pad_c))),       # [D, Dp]
            "w2p": jnp.pad(self.w2 + eye_d, ((0, pad_c), (0, pad_c))),   # [Dp, Dp]
            "b1p": jnp.pad(self.b1, ((0, 0), (0, pad_c))),               # [1, Dp]
            "b2p": jnp.pad(self.b2, ((0, 0), (0, pad_c))),               # [1, Dp]
            "wop": jnp.pad(self.wo.T, ((0, 0), (0, pad_c))),             # [1, Dp]
            "bop": self.bo,                                              # [1, 1]
        }

    def __call__(self, x, *, tile_b=None):
        # x: [B, n_dense + n_sparse]; dense columns are floats, sparse columns
        # carry integer category ids (mirrors the torch module's .long() cast).
        return _deepcrossing_apply(
            self.params, x, n_dense=self.n_dense,
            tile_b=self.tile_b if tile_b is None else tile_b)


def _reference_forward(model, x):
    """Pure-JAX f32 reference, algebraically identical to the torch forward
    (x + x@W == x@(W+I); a 1-wide Linear is a sum of products)."""
    x_dense = x[:, :model.n_dense].astype(jnp.float32)
    x_sparse = x[:, model.n_dense:].astype(jnp.int32)
    embeds = [tbl[x_sparse[:, i]] for i, tbl in enumerate(model.emb_tables)]
    h = jnp.concatenate([x_dense] + embeds, axis=1)                  # [B, D]
    eye = jnp.eye(model.D, dtype=jnp.float32)
    h = jnp.maximum(h @ (model.w1 + eye) + model.b1, 0.0)
    h = jnp.maximum(h @ (model.w2 + eye) + model.b2, 0.0)
    s = jnp.sum(h * model.wo[:, 0][None, :], axis=-1, keepdims=True) + model.bo
    return jax.nn.sigmoid(s)


def _make_input(key, model, batch):
    k_dense, k_sparse = jax.random.split(key)
    x_dense = jax.random.normal(k_dense, (batch, model.n_dense),
                                dtype=jnp.float32)
    max_ids = jnp.array([c["field_feat_num"] for c in model.sparse_feature_columns],
                        dtype=jnp.int32)
    x_sparse = jax.random.randint(
        k_sparse, (batch, model.n_sparse), 0, 1_000_000) % max_ids
    return jnp.concatenate([x_dense, x_sparse.astype(jnp.float32)], axis=1)


if __name__ == "__main__":
    key = jax.random.PRNGKey(0)
    k_emb, k_in1, k_in2 = jax.random.split(key, 3)

    # Small synthetic feature-column config: D = 3 + 4*8 = 35 (streamed
    # unpadded; weights padded to Dp = 128 on-chip).
    dense_feature_columns = [{"name": f"d{i}"} for i in range(3)]
    sparse_feature_columns = [
        {"name": "s0", "field_feat_num": 5},
        {"name": "s1", "field_feat_num": 7},
        {"name": "s2", "field_feat_num": 6},
        {"name": "s3", "field_feat_num": 4},
    ]
    K = 8

    model = DeepCrossingJAX((dense_feature_columns, sparse_feature_columns),
                            K, k_emb)

    # Tolerances: kernel streams bf16 activations (f32 accumulation), so
    # compare to the f32 reference with ~1e-2-scale tolerance on the sigmoid.
    ATOL = RTOL = 2e-2

    # Case 1: tiny batch, default tile (single grid step).
    B1 = 8
    x1 = _make_input(k_in1, model, B1)
    out1 = jax.block_until_ready(model(x1))
    ref1 = _reference_forward(model, x1)
    assert out1.shape == (B1, 1)
    assert jnp.allclose(out1, ref1, atol=ATOL, rtol=RTOL), "mismatch (case 1)"

    # Case 2: batch not a multiple of the tile, tile_b=128 -> 3-tile grid,
    # resident weights across steps, lane-dense multi-block output, row
    # padding sliced off by the wrapper.
    B2 = 300
    x2 = _make_input(k_in2, model, B2)
    out2 = jax.block_until_ready(model(x2, tile_b=128))
    ref2 = _reference_forward(model, x2)
    assert out2.shape == (B2, 1)
    assert jnp.allclose(out2, ref2, atol=ATOL, rtol=RTOL), "mismatch (case 2)"

    print("KERNEL_OK")
</pallas_src>

<mosaic_0001>
module attributes {stable_mosaic.version = 11 : i64} {
  func.func @_deepcrossing_kernel(%arg0: i32, %arg1: memref<16x35xbf16, #tpu.memory_space<vmem>>, %arg2: memref<35x128xf32, #tpu.memory_space<vmem>>, %arg3: memref<1x128xf32, #tpu.memory_space<vmem>>, %arg4: memref<128x128xf32, #tpu.memory_space<vmem>>, %arg5: memref<1x128xf32, #tpu.memory_space<vmem>>, %arg6: memref<1x128xf32, #tpu.memory_space<vmem>>, %arg7: memref<1x1xf32, #tpu.memory_space<vmem>>, %arg8: memref<1x16xf32, #tpu.memory_space<vmem>>) attributes {dimension_semantics = [#tpu.dimension_semantics<parallel>], iteration_bounds = array<i64: 1>, scalar_prefetch = 0 : i64, scratch_operands = 0 : i64, tpu.core_type = #tpu.core_type<tc>, window_params = [{transform_indices = @transform_0, window_bounds = array<i64: 16, 35>}, {pipeline_mode = #tpu.pipeline_mode<synchronous>, transform_indices = @transform_1, window_bounds = array<i64: 35, 128>}, {pipeline_mode = #tpu.pipeline_mode<synchronous>, transform_indices = @transform_2, window_bounds = array<i64: 1, 128>}, {pipeline_mode = #tpu.pipeline_mode<synchronous>, transform_indices = @transform_3, window_bounds = array<i64: 128, 128>}, {pipeline_mode = #tpu.pipeline_mode<synchronous>, transform_indices = @transform_4, window_bounds = array<i64: 1, 128>}, {pipeline_mode = #tpu.pipeline_mode<synchronous>, transform_indices = @transform_5, window_bounds = array<i64: 1, 128>}, {pipeline_mode = #tpu.pipeline_mode<synchronous>, transform_indices = @transform_6, window_bounds = array<i64: 1, 1>}, {transform_indices = @transform_7, window_bounds = array<i64: 1, 16>}]} {
    %c0 = arith.constant 0 : index
    %c0_0 = arith.constant 0 : index
    %0 = vector.load %arg1[%c0, %c0_0] : memref<16x35xbf16, #tpu.memory_space<vmem>>, vector<16x35xbf16>
    %1 = arith.extf %0 : vector<16x35xbf16> to vector<16x35xf32>
    %c0_1 = arith.constant 0 : index
    %c0_2 = arith.constant 0 : index
    %2 = vector.load %arg2[%c0_1, %c0_2] : memref<35x128xf32, #tpu.memory_space<vmem>>, vector<35x128xf32>
    %cst = arith.constant dense<0.000000e+00> : vector<16x128xf32>
    %3 = tpu.matmul %1, %2, %cst {dimension_numbers = #tpu.dot_dimension_numbers<[1], [0], [0], [1], [0, 0, 1, 1], [], []>} : vector<16x35xf32>, vector<35x128xf32>, vector<16x128xf32> -> vector<16x128xf32>
    %c0_3 = arith.constant 0 : index
    %c0_4 = arith.constant 0 : index
    %4 = vector.load %arg3[%c0_3, %c0_4] : memref<1x128xf32, #tpu.memory_space<vmem>>, vector<1x128xf32>
    %5 = vector.broadcast %4 : vector<1x128xf32> to vector<16x128xf32>
    %6 = arith.addf %3, %5 : vector<16x128xf32>
    %cst_5 = arith.constant 0.000000e+00 : f32
    %7 = vector.broadcast %cst_5 : f32 to vector<16x128xf32>
    %8 = arith.maximumf %6, %7 : vector<16x128xf32>
    %c0_6 = arith.constant 0 : index
    %c0_7 = arith.constant 0 : index
    %9 = vector.load %arg4[%c0_6, %c0_7] : memref<128x128xf32, #tpu.memory_space<vmem>>, vector<128x128xf32>
    %cst_8 = arith.constant dense<0.000000e+00> : vector<16x128xf32>
    %10 = tpu.matmul %8, %9, %cst_8 {dimension_numbers = #tpu.dot_dimension_numbers<[1], [0], [0], [1], [0, 0, 1, 1], [], []>} : vector<16x128xf32>, vector<128x128xf32>, vector<16x128xf32> -> vector<16x128xf32>
    %c0_9 = arith.constant 0 : index
    %c0_10 = arith.constant 0 : index
    %11 = vector.load %arg5[%c0_9, %c0_10] : memref<1x128xf32, #tpu.memory_space<vmem>>, vector<1x128xf32>
    %12 = vector.broadcast %11 : vector<1x128xf32> to vector<16x128xf32>
    %13 = arith.addf %10, %12 : vector<16x128xf32>
    %cst_11 = arith.constant 0.000000e+00 : f32
    %14 = vector.broadcast %cst_11 : f32 to vector<16x128xf32>
    %15 = arith.maximumf %13, %14 : vector<16x128xf32>
    %c0_12 = arith.constant 0 : index
    %c0_13 = arith.constant 0 : index
    %16 = vector.load %arg6[%c0_12, %c0_13] : memref<1x128xf32, #tpu.memory_space<vmem>>, vector<1x128xf32>
    %17 = vector.broadcast %16 : vector<1x128xf32> to vector<16x128xf32>
    %18 = arith.mulf %15, %17 : vector<16x128xf32>
    %cst_14 = arith.constant dense<0.000000e+00> : vector<16xf32>
    %19 = vector.multi_reduction <add>, %18, %cst_14 [1] : vector<16x128xf32> to vector<16xf32>
    %20 = vector.shape_cast %19 : vector<16xf32> to vector<1x16xf32>
    %c0_15 = arith.constant 0 : index
    %c0_16 = arith.constant 0 : index
    %21 = vector.load %arg7[%c0_15, %c0_16] : memref<1x1xf32, #tpu.memory_space<vmem>>, vector<1x1xf32>
    %22 = vector.broadcast %21 : vector<1x1xf32> to vector<1x16xf32>
    %23 = arith.addf %20, %22 : vector<1x16xf32>
    %24 = arith.negf %23 : vector<1x16xf32>
    %25 = math.exp %24 : vector<1x16xf32>
    %cst_17 = arith.constant 1.000000e+00 : f32
    %26 = vector.broadcast %cst_17 : f32 to vector<1x16xf32>
    %27 = arith.addf %26, %25 : vector<1x16xf32>
    %28 = arith.divf %26, %27 : vector<1x16xf32>
    %c0_18 = arith.constant 0 : index
    %c0_19 = arith.constant 0 : index
    %29 = vector.load %arg8[%c0_18, %c0_19] : memref<1x16xf32, #tpu.memory_space<vmem>>, vector<1x16xf32>
    tpu.vector_store %arg8[%c0_18, %c0_19], %28 {strides = array<i32>} : memref<1x16xf32, #tpu.memory_space<vmem>>, vector<1x16xf32>,
    return
  }
  func.func @transform_0(%arg0: i32) -> (i32, i32) {
    %c0_i32 = arith.constant 0 : i32
    %c0_i32_0 = arith.constant 0 : i32
    return %arg0, %c0_i32 : i32, i32
  }
  func.func @transform_1(%arg0: i32) -> (i32, i32) {
    %c0_i32 = arith.constant 0 : i32
    %c0_i32_0 = arith.constant 0 : i32
    %c0_i32_1 = arith.constant 0 : i32
    return %c0_i32, %c0_i32_0 : i32, i32
  }
  func.func @transform_2(%arg0: i32) -> (i32, i32) {
    %c0_i32 = arith.constant 0 : i32
    %c0_i32_0 = arith.constant 0 : i32
    %c0_i32_1 = arith.constant 0 : i32
    return %c0_i32, %c0_i32_0 : i32, i32
  }
  func.func @transform_3(%arg0: i32) -> (i32, i32) {
    %c0_i32 = arith.constant 0 : i32
    %c0_i32_0 = arith.constant 0 : i32
    %c0_i32_1 = arith.constant 0 : i32
    return %c0_i32, %c0_i32_0 : i32, i32
  }
  func.func @transform_4(%arg0: i32) -> (i32, i32) {
    %c0_i32 = arith.constant 0 : i32
    %c0_i32_0 = arith.constant 0 : i32
    %c0_i32_1 = arith.constant 0 : i32
    return %c0_i32, %c0_i32_0 : i32, i32
  }
  func.func @transform_5(%arg0: i32) -> (i32, i32) {
    %c0_i32 = arith.constant 0 : i32
    %c0_i32_0 = arith.constant 0 : i32
    %c0_i32_1 = arith.constant 0 : i32
    return %c0_i32, %c0_i32_0 : i32, i32
  }
  func.func @transform_6(%arg0: i32) -> (i32, i32) {
    %c0_i32 = arith.constant 0 : i32
    %c0_i32_0 = arith.constant 0 : i32
    %c0_i32_1 = arith.constant 0 : i32
    return %c0_i32, %c0_i32_0 : i32, i32
  }
  func.func @transform_7(%arg0: i32) -> (i32, i32) {
    %c0_i32 = arith.constant 0 : i32
    %c0_i32_0 = arith.constant 0 : i32
    return %c0_i32, %arg0 : i32, i32
  }
}

</mosaic_0001>

<llo_original>
// kernel: _deepcrossing_apply.1
$region0: #{_deepcrossing_apply.1}
  #allocation0 [shape = 'u32[]', space=smem, size = 0x4, offset = 0x4, fixed_abs, tag = 'smem constant byte address 0x4 - core index']
  #allocation1 [shape = 'u32[144,128]{1,0:T(1,128)}', space=vmem, size = 0x12000, scoped, tag = 'internal scratch']
  #allocation2 [shape = 'f32[1,1]{1,0:T(1,128)S(1)}', space=vmem, size = 0x200, scoped, tag = 'scoped memory for _deepcrossing_apply.1']
  %s0 = inlined_call_operand.vmem [shape: bf16[16,35], index: 0, kind: input, shape index: {}]
  %s1 = inlined_call_operand.vmem [shape: f32[35,128], index: 1, kind: input, shape index: {}]
  %s2 = inlined_call_operand.vmem [shape: f32[1,128], index: 2, kind: input, shape index: {}]
  %s3 = inlined_call_operand.hbm [shape: f32[128,128], index: 3, kind: input, shape index: {}]
  %s4 = inlined_call_operand.vmem [shape: f32[1,128], index: 4, kind: input, shape index: {}]
  %s5 = inlined_call_operand.vmem [shape: f32[1,128], index: 5, kind: input, shape index: {}]
  %s6 = inlined_call_operand.<no memory space> [shape: f32[1,1], index: 6, kind: input, shape index: {}]
  %s7 = inlined_call_operand.vmem [shape: f32[1,16], index: 7, kind: output, shape index: {}]
  %s8 = sld [smem:[#allocation0]]
  $region42: #{_deepcrossing_apply.1} parent=0
    _
  %s10 = ssub.s32 1, %s8
  %s11 = scalar_select 0, %s10, %s8
  %v12 = vstv %s6
  %13 = vst [vmem:[#allocation2] sm:$0x1] %v12
  $region1: #{_deepcrossing_apply.1} parent=0
    #allocation3 [shape = 'u8[65536]{0}', space=vmem, size = 0x10000, scoped, tag = 'input window, operand 3, single buffered']
    #allocation4 [shape = 's32[1]{0}', space=sflag, size = 0x4, scoped, tag = 'scoped memory for _deepcrossing_apply.1']
    %14 = vsyncpa [#allocation4], 0
    // Predicated region
    $region2: #{_deepcrossing_apply.1} parent=1 // pred_check
      _
    $region3: #{_deepcrossing_apply.1} parent=1 // pred_check_branch
      %16 = sbr.rel (0) target = $region5
    $region4: #{_deepcrossing_apply.1} parent=1 // pred_region
      _
    $region5: #{_deepcrossing_apply.1} parent=1 // pred_fallthru
      _
    // Predicated region
    $region6: #{_deepcrossing_apply.1} parent=1 // pred_check
      _
    $region7: #{_deepcrossing_apply.1} parent=1 // pred_check_branch
      %18 = sbr.rel (0) target = $region9
    $region8: #{_deepcrossing_apply.1} parent=1 // pred_region
      _
    $region9: #{_deepcrossing_apply.1} parent=1 // pred_fallthru
      _
    // Predicated region
    $region10: #{_deepcrossing_apply.1} parent=1 // pred_check
      _
    $region11: #{_deepcrossing_apply.1} parent=1 // pred_check_branch
      %20 = sbr.rel (0) target = $region13
    $region12: #{_deepcrossing_apply.1} parent=1 // pred_region
      _
    $region13: #{_deepcrossing_apply.1} parent=1 // pred_fallthru
      _
    // Predicated region
    $region14: #{_deepcrossing_apply.1} parent=1 // pred_check
      _
    $region15: #{_deepcrossing_apply.1} parent=1 // pred_check_branch
      %22 = sbr.rel (0) target = $region17
    $region16: #{_deepcrossing_apply.1} parent=1 // pred_region
      %s24 = ssub.s32 2048, 2048
      %25 = vsyncadd [#allocation4], %s24
      %s26 = sshll.u32 [#allocation3], 4
      %s27 = int_to_ptr.vmem [resolvable:$true] %s26
      %32 = dma.hbm_to_vmem [thread:$0]  %s3, 2048, %s27, [#allocation4], 128, 128, 8
    $region17: #{_deepcrossing_apply.1} parent=1 // pred_fallthru
      _
    // Predicated region
    $region18: #{_deepcrossing_apply.1} parent=1 // pred_check
      _
    $region19: #{_deepcrossing_apply.1} parent=1 // pred_check_branch
      %34 = sbr.rel (0) target = $region21
    $region20: #{_deepcrossing_apply.1} parent=1 // pred_region
      _
    $region21: #{_deepcrossing_apply.1} parent=1 // pred_fallthru
      _
    // Predicated region
    $region22: #{_deepcrossing_apply.1} parent=1 // pred_check
      _
    $region23: #{_deepcrossing_apply.1} parent=1 // pred_check_branch
      %36 = sbr.rel (0) target = $region25
    $region24: #{_deepcrossing_apply.1} parent=1 // pred_region
      _
    $region25: #{_deepcrossing_apply.1} parent=1 // pred_fallthru
      _
    // Predicated region
    $region26: #{_deepcrossing_apply.1} parent=1 // pred_check
      _
    $region27: #{_deepcrossing_apply.1} parent=1 // pred_check_branch
      %38 = sbr.rel (0) target = $region29
    $region28: #{_deepcrossing_apply.1} parent=1 // pred_region
      _
    $region29: #{_deepcrossing_apply.1} parent=1 // pred_fallthru
      _
    // Predicated region
    $region30: #{_deepcrossing_apply.1} parent=1 // pred_check
      _
    $region31: #{_deepcrossing_apply.1} parent=1 // pred_check_branch
      %40 = sbr.rel (0) target = $region33
    $region32: #{_deepcrossing_apply.1} parent=1 // pred_region
      %41 = dma.done [#allocation4], 2048
    $region33: #{_deepcrossing_apply.1} parent=1 // pred_fallthru
      _
    %v42 = vld [vmem:[%s0] sm:$0xf]
    %v43 = vld [vmem:[%s0 + $0x4] sm:$0xf]
    %v44 = vunpack.c.l.bf16 %v42
    %v45 = vunpack.c.l.bf16 %v43
    %v46 = vld [vmem:[%s1] sm:$0xff]
    %v47 = vld [vmem:[%s1 + $0x8] sm:$0xff]
    %v48 = vld [vmem:[%s1 + $0x10] sm:$0xff]
    %v49 = vld [vmem:[%s1 + $0x18] sm:$0xff]
    %v50 = vld [vmem:[%s1 + $0x20] sm:$0x7]
    %v51 = vld [vmem:[%s2] sm:$0x1]
    %v53 = vlaneseq
    %v54 = vshrl.u32 %v53, 7
    %v55 = vsub.s32 0, %v54
    %v56 = vrot.slane %v51, %v55
    %vm58 = vcmask 285696
    %v60 = vsel %vm58, %v44, 0
    %v63 = vsel %vm58, %v45, 0
    %vm65 = vcmask 1042432
    %v67 = vsel %vm65, %v50, 0
    %69 = vmatprep.subr.mxu0 0.0
    %70 = vmatpush1.msra.mxu0 %v46
    %71 = vmatprep.subr.mxu0 0.0
    %72 = vmatpush1.msra.mxu0 %v47
    %73 = vmatprep.subr.mxu0 0.0
    %74 = vmatpush1.msra.mxu0 %v48
    %75 = vmatprep.subr.mxu0 0.0
    %76 = vmatpush1.msra.mxu0 %v49
    %77 = vmatprep.subr.mxu0 0.0
    %78 = vmatpush1.msra.mxu0 %v67
    %79 = vmatprep.subr.mxu0 0.0
    %80 = vmatpush1.msra.mxu0 0.0
    %81 = vmatprep.subr.mxu0 0.0
    %82 = vmatpush1.msra.mxu0 0.0
    %83 = vmatprep.subr.mxu0 0.0
    %84 = vmatpush1.msra.mxu0 0.0
    %85 = vmatprep.subr.mxu0 0.0
    %86 = vmatpush1.msra.mxu0 0.0
    %87 = vmatprep.subr.mxu0 0.0
    %88 = vmatpush1.msra.mxu0 0.0
    %89 = vmatprep.subr.mxu0 0.0
    %90 = vmatpush1.msra.mxu0 0.0
    %91 = vmatprep.subr.mxu0 0.0
    %92 = vmatpush1.msra.mxu0 0.0
    %93 = vmatprep.subr.mxu0 0.0
    %94 = vmatpush1.msra.mxu0 0.0
    %95 = vmatprep.subr.mxu0 0.0
    %96 = vmatpush1.msra.mxu0 0.0
    %97 = vmatprep.subr.mxu0 0.0
    %98 = vmatpush1.msra.mxu0 0.0
    %99 = vmatprep.subr.mxu0 0.0
    %100 = vmatpush1.msra.mxu0 0.0
    %101 = vmatprep.subr.mxu0 0.0
    %102 = vmatpush1.msra.mxu0 0.0
    %103 = vmatprep.subr.mxu0 0.0
    %104 = vmatpush1.msra.mxu0 0.0
    %105 = vmatprep.subr.mxu0 0.0
    %106 = vmatpush1.msra.mxu0 0.0
    %107 = vmatprep.subr.mxu0 0.0
    %108 = vmatpush1.msra.mxu0 0.0
    %109 = vmatprep.subr.mxu0 0.0
    %110 = vmatpush1.msra.mxu0 0.0
    %111 = vmatprep.subr.mxu0 0.0
    %112 = vmatpush1.msra.mxu0 0.0
    %113 = vmatprep.subr.mxu0 0.0
    %114 = vmatpush1.msra.mxu0 0.0
    %115 = vmatprep.subr.mxu0 0.0
    %116 = vmatpush1.msra.mxu0 0.0
    %117 = vmatprep.subr.mxu0 0.0
    %118 = vmatpush1.msra.mxu0 0.0
    %119 = vmatprep.subr.mxu0 0.0
    %120 = vmatpush1.msra.mxu0 0.0
    %121 = vmatprep.subr.mxu0 0.0
    %122 = vmatpush1.msra.mxu0 0.0
    %123 = vmatprep.subr.mxu0 0.0
    %124 = vmatpush1.msra.mxu0 0.0
    %125 = vmatprep.subr.mxu0 0.0
    %126 = vmatpush1.msra.mxu0 0.0
    %127 = vmatprep.subr.mxu0 0.0
    %128 = vmatpush1.msra.mxu0 0.0
    %129 = vmatprep.subr.mxu0 0.0
    %130 = vmatpush1.msra.mxu0 0.0
    %131 = vmatprep.subr.mxu0 0.0
    %132 = vmatpush1.msra.mxu0 0.0
    %133 = vmatprep.mubr.f32.mxu0 0.0
    %134 = vmatmul.mubr.f32.gmra.mrb[0].mxu0 %v60
    %v135 = vpop.f32.mrb[0].mxu0
    %v136 = vadd.f32 %v56, %v135
    %v137 = vpop.f32.mrb[0].mxu0
    %138 = vmatprep.mubr.f32.mxu0 0.0
    %139 = vmatmul.mubr.f32.gmra.mrb[0].mxu0 %v63
    %v140 = vpop.f32.mrb[0].mxu0
    %v141 = vadd.f32 %v56, %v140
    %v142 = vpop.f32.mrb[0].mxu0
    %143 = vdwg.mxu0
    %v144 = vmax.f32 %v136, 0.0
    %v145 = vmax.f32 %v141, 0.0
    %v146 = vld [vmem:[#allocation3] sm:$0xff]
    %v147 = vld [vmem:[#allocation3 + $0x8] sm:$0xff]
    %v148 = vld [vmem:[#allocation3 + $0x10] sm:$0xff]
    %v149 = vld [vmem:[#allocation3 + $0x18] sm:$0xff]
    %v150 = vld [vmem:[#allocation3 + $0x20] sm:$0xff]
    %v151 = vld [vmem:[#allocation3 + $0x28] sm:$0xff]
    %v152 = vld [vmem:[#allocation3 + $0x30] sm:$0xff]
    %v153 = vld [vmem:[#allocation3 + $0x38] sm:$0xff]
    %v154 = vld [vmem:[#allocation3 + $0x40] sm:$0xff]
    %v155 = vld [vmem:[#allocation3 + $0x48] sm:$0xff]
    %v156 = vld [vmem:[#allocation3 + $0x50] sm:$0xff]
    %v157 = vld [vmem:[#allocation3 + $0x58] sm:$0xff]
    %v158 = vld [vmem:[#allocation3 + $0x60] sm:$0xff]
    %v159 = vld [vmem:[#allocation3 + $0x68] sm:$0xff]
    %v160 = vld [vmem:[#allocation3 + $0x70] sm:$0xff]
    %v161 = vld [vmem:[#allocation3 + $0x78] sm:$0xff]
    %v162 = vld [vmem:[%s4] sm:$0x1]
    %v164 = vlaneseq
    %v165 = vshrl.u32 %v164, 7
    %v166 = vsub.s32 0, %v165
    %v167 = vrot.slane %v162, %v166
    %169 = vmatprep.subr.mxu0 0.0
    %170 = vmatpush1.msra.mxu0 %v146
    %171 = vmatprep.subr.mxu0 0.0
    %172 = vmatpush1.msra.mxu0 %v147
    %173 = vmatprep.subr.mxu0 0.0
    %174 = vmatpush1.msra.mxu0 %v148
    %175 = vmatprep.subr.mxu0 0.0
    %176 = vmatpush1.msra.mxu0 %v149
    %177 = vmatprep.subr.mxu0 0.0
    %178 = vmatpush1.msra.mxu0 %v150
    %179 = vmatprep.subr.mxu0 0.0
    %180 = vmatpush1.msra.mxu0 %v151
    %181 = vmatprep.subr.mxu0 0.0
    %182 = vmatpush1.msra.mxu0 %v152
    %183 = vmatprep.subr.mxu0 0.0
    %184 = vmatpush1.msra.mxu0 %v153
    %185 = vmatprep.subr.mxu0 0.0
    %186 = vmatpush1.msra.mxu0 %v154
    %187 = vmatprep.subr.mxu0 0.0
    %188 = vmatpush1.msra.mxu0 %v155
    %189 = vmatprep.subr.mxu0 0.0
    %190 = vmatpush1.msra.mxu0 %v156
    %191 = vmatprep.subr.mxu0 0.0
    %192 = vmatpush1.msra.mxu0 %v157
    %193 = vmatprep.subr.mxu0 0.0
    %194 = vmatpush1.msra.mxu0 %v158
    %195 = vmatprep.subr.mxu0 0.0
    %196 = vmatpush1.msra.mxu0 %v159
    %197 = vmatprep.subr.mxu0 0.0
    %198 = vmatpush1.msra.mxu0 %v160
    %199 = vmatprep.subr.mxu0 0.0
    %200 = vmatpush1.msra.mxu0 %v161
    %201 = vmatprep.subr.mxu0 0.0
    %202 = vmatpush1.msra.mxu0 0.0
    %203 = vmatprep.subr.mxu0 0.0
    %204 = vmatpush1.msra.mxu0 0.0
    %205 = vmatprep.subr.mxu0 0.0
    %206 = vmatpush1.msra.mxu0 0.0
    %207 = vmatprep.subr.mxu0 0.0
    %208 = vmatpush1.msra.mxu0 0.0
    %209 = vmatprep.subr.mxu0 0.0
    %210 = vmatpush1.msra.mxu0 0.0
    %211 = vmatprep.subr.mxu0 0.0
    %212 = vmatpush1.msra.mxu0 0.0
    %213 = vmatprep.subr.mxu0 0.0
    %214 = vmatpush1.msra.mxu0 0.0
    %215 = vmatprep.subr.mxu0 0.0
    %216 = vmatpush1.msra.mxu0 0.0
    %217 = vmatprep.subr.mxu0 0.0
    %218 = vmatpush1.msra.mxu0 0.0
    %219 = vmatprep.subr.mxu0 0.0
    %220 = vmatpush1.msra.mxu0 0.0
    %221 = vmatprep.subr.mxu0 0.0
    %222 = vmatpush1.msra.mxu0 0.0
    %223 = vmatprep.subr.mxu0 0.0
    %224 = vmatpush1.msra.mxu0 0.0
    %225 = vmatprep.subr.mxu0 0.0
    %226 = vmatpush1.msra.mxu0 0.0
    %227 = vmatprep.subr.mxu0 0.0
    %228 = vmatpush1.msra.mxu0 0.0
    %229 = vmatprep.subr.mxu0 0.0
    %230 = vmatpush1.msra.mxu0 0.0
    %231 = vmatprep.subr.mxu0 0.0
    %232 = vmatpush1.msra.mxu0 0.0
    %233 = vmatprep.mubr.f32.mxu0 0.0
    %234 = vmatmul.mubr.f32.gmra.mrb[0].mxu0 %v144
    %v235 = vpop.f32.mrb[0].mxu0
    %v236 = vadd.f32 %v167, %v235
    %v237 = vpop.f32.mrb[0].mxu0
    %238 = vmatprep.mubr.f32.mxu0 0.0
    %239 = vmatmul.mubr.f32.gmra.mrb[0].mxu0 %v145
    %v240 = vpop.f32.mrb[0].mxu0
    %v241 = vadd.f32 %v167, %v240
    %v242 = vpop.f32.mrb[0].mxu0
    %243 = vdwg.mxu0
    %v244 = vmax.f32 %v236, 0.0
    %v245 = vmax.f32 %v241, 0.0
    %v246 = vld [vmem:[%s5] sm:$0x1]
    %v248 = vlaneseq
    %v249 = vshrl.u32 %v248, 7
    %v250 = vsub.s32 0, %v249
    %v251 = vrot.slane %v246, %v250
    %v253 = vmul.f32 %v244, %v251
    %v254 = vmul.f32 %v245, %v251
    %255 = vadd.xlane.f32.xlu0 %v253
    %v256 = vpop.xlane.xlu0 %255
    %257 = vadd.xlane.f32.xlu0 %v254
    %v258 = vpop.xlane.xlu0 %257
    %v259 = vld [vmem:[#allocation2] sm:$0x1]
    %261 = vset.pattern.permute.xlu0 0
    %262 = vperm.xlu0 %261, %v259
    %v263 = vpop.permute.xlu0 %262
    %v265 = vlaneseq
    %v266 = vshrl.u32 %v265, 7
    %v267 = vsub.s32 0, %v266
    %v268 = vrot.slane %v263, %v267
    %v269 = vadd.f32 %v256, %v268
    %v270 = vadd.f32 %v258, %v268
    %v271 = vxor.u32 %v269, 2147483648
    %v272 = vxor.u32 %v270, 2147483648
    %v273 = vmul.f32 %v271, 1.442695
    %v274 = vpow.pop %v273
    %v275 = vmul.f32 %v272, 1.442695
    %v276 = vpow.pop %v275
    %v277 = vadd.f32 %v274, 1.0
    %v278 = vadd.f32 %v276, 1.0
    %v279 = vrcp.pop %v277
    %v280 = vmul.f32 1.0, %v279
    %v281 = vrcp.pop %v278
    %v282 = vmul.f32 1.0, %v281
    %v285 = vlaneseq
    %v286 = vand.u32 %v285, 127
    %v287 = vlaneseq
    %v288 = vshrl.u32 %v287, 7
    %v289 = vsub.s32 %v286, %v288
    %v290 = vrot.slane %v280, %v289
    %v291 = vadd.s32 %v286, 4294967288
    %v292 = vlaneseq
    %v293 = vshrl.u32 %v292, 7
    %v294 = vsub.s32 %v291, %v293
    %v295 = vrot.slane %v282, %v294
    %vm296 = vcmask 130112
    %v297 = vsel %vm296, %v295, %v290
    %vm299 = vcmask 122880
    %300 = vst.msk [vmem:[%s7] sm:$0x1] %vm299, %v297
    // Predicated region
    $region34: #{_deepcrossing_apply.1} parent=1 // pred_check
      _
    $region35: #{_deepcrossing_apply.1} parent=1 // pred_check_branch
      %302 = sbr.rel (0) target = $region37
    $region36: #{_deepcrossing_apply.1} parent=1 // pred_region
      _
    $region37: #{_deepcrossing_apply.1} parent=1 // pred_fallthru
      _
    // Predicated region
    $region38: #{_deepcrossing_apply.1} parent=1 // pred_check
      _
    $region39: #{_deepcrossing_apply.1} parent=1 // pred_check_branch
      %304 = sbr.rel (0) target = $region41
    $region40: #{_deepcrossing_apply.1} parent=1 // pred_region
      _
    $region41: #{_deepcrossing_apply.1} parent=1 // pred_fallthru
      _
    %305 = vsyncpa [#allocation4], 1

</llo_original>
